<compile_context>
chip_gen: v7x
topology: tpu7x:2x2x1
jax: 0.10.0
libtpu: 0.0.40
codegen_flags: <defaults>
</compile_context>

<pallas_src>
import jax
import jax.numpy as jnp
from jax import lax
from jax.experimental import pallas as pl
from jax.experimental.pallas import tpu as pltpu

BN_EPS = 1e-5


def fc_block_kernel(x_ref, wt_ref, gb_ref, o_ref):
    # x_ref:  (N, in_f)   bf16 activations
    # wt_ref: (in_f, TN)  bf16 pre-transposed weight tile
    # gb_ref: (2, TN)     f32 packed [gamma; beta]
    # o_ref:  (N, TN)     f32 output tile (lane-dense, TN % 128 == 0)
    x = x_ref[...]
    wt = wt_ref[...]

    # ---- Linear (no bias; BN's mean subtraction cancels it exactly) ----
    y = jnp.dot(x, wt, preferred_element_type=jnp.float32)       # (N, TN) f32

    # ---- BatchNorm1d, training-mode batch stats (biased variance) ----
    n = x_ref.shape[0]
    inv_n = 1.0 / n
    s = jnp.sum(y, axis=0, keepdims=True)                        # (1, TN)
    s2 = jnp.sum(y * y, axis=0, keepdims=True)                   # (1, TN)
    mean = s * inv_n
    var = jnp.maximum(s2 * inv_n - mean * mean, 0.0)
    inv_std = lax.rsqrt(var + BN_EPS)                            # EUP

    gamma = gb_ref[0:1, :]
    beta = gb_ref[1:2, :]
    y_bn = (y - mean) * (inv_std * gamma) + beta

    # ---- SiLU: z * sigmoid(z) (sigmoid on EUP) ----
    o_ref[...] = (y_bn * jax.nn.sigmoid(y_bn)).astype(o_ref.dtype)


def prepare_params(weight, gamma, beta, matmul_dtype=jnp.bfloat16):
    """One-time parameter packing (do NOT call per forward).

    weight: (out, in) PyTorch layout -> stored pre-transposed, zero-padded and
    cast to bf16 as (in, out_pad) with out_pad a multiple of 128.
    gamma/beta: packed into a single (2, out_pad) f32 array.
    The Linear bias is intentionally not needed (cancelled by BatchNorm).
    """
    out_f, in_f = weight.shape
    out_pad = ((out_f + 127) // 128) * 128
    wt_pad = jnp.zeros((in_f, out_pad), matmul_dtype)
    wt_pad = wt_pad.at[:, :out_f].set(weight.T.astype(matmul_dtype))
    gb = jnp.zeros((2, out_pad), jnp.float32)
    gb = gb.at[0, :out_f].set(gamma.astype(jnp.float32))
    gb = gb.at[1, :out_f].set(beta.astype(jnp.float32))
    return wt_pad, gb


def fc_block_forward(x, wt_pad, gb, out_features, *, tn=None,
                     matmul_dtype=jnp.bfloat16):
    """x: (N, in_features) f32. Returns (N, out_features) f32."""
    n, in_f = x.shape
    out_pad = wt_pad.shape[1]
    if tn is None:
        # 256-wide tiles fully occupy the 2x256x256 MXU on v6e/v7x; fall back
        # to 128 (full occupancy on v5e's 128x128 MXUs) when out_pad is small.
        tn = 256 if out_pad % 256 == 0 else 128
    assert out_pad % tn == 0

    x_mm = x.astype(matmul_dtype)   # halve activation DMA bytes, bf16 MXU path

    y = pl.pallas_call(
        fc_block_kernel,
        out_shape=jax.ShapeDtypeStruct((n, out_pad), jnp.float32),
        grid_spec=pltpu.PrefetchScalarGridSpec(
            num_scalar_prefetch=0,
            grid=(out_pad // tn,),
            in_specs=[
                pl.BlockSpec((n, in_f), lambda j: (0, 0)),     # x, reused per tile
                pl.BlockSpec((in_f, tn), lambda j: (0, j)),    # weight column tile
                pl.BlockSpec((2, tn), lambda j: (0, j)),       # packed gamma/beta
            ],
            out_specs=pl.BlockSpec((n, tn), lambda j: (0, j)),
        ),
        compiler_params=pltpu.CompilerParams(
            dimension_semantics=("parallel",),     # shard out-tiles across TCs
            vmem_limit_bytes=32 * 1024 * 1024,     # safe on v5e/v6e/v7x
        ),
    )(x_mm, wt_pad, gb)

    return y[:, :out_features]


def init_params(key, in_features, out_features):
    # Deterministic init mirroring nn.Linear's default (uniform +/- 1/sqrt(in)).
    kw, kb = jax.random.split(key)
    bound = 1.0 / jnp.sqrt(jnp.float32(in_features))
    weight = jax.random.uniform(kw, (out_features, in_features), jnp.float32,
                                minval=-bound, maxval=bound)
    bias = jax.random.uniform(kb, (out_features,), jnp.float32,
                              minval=-bound, maxval=bound)
    gamma = jnp.ones((out_features,), jnp.float32)   # BatchNorm1d weight
    beta = jnp.zeros((out_features,), jnp.float32)   # BatchNorm1d bias
    return weight, bias, gamma, beta


if __name__ == "__main__":
    key = jax.random.PRNGKey(0)
    k_x, k_p = jax.random.split(key)

    batch, in_features, out_features = 8, 32, 64
    x = jax.random.normal(k_x, (batch, in_features), jnp.float32)
    weight, bias, gamma, beta = init_params(k_p, in_features, out_features)

    wt_pad, gb = prepare_params(weight, gamma, beta)   # one-time packing
    out = fc_block_forward(x, wt_pad, gb, out_features)
    jax.block_until_ready(out)

    # Reference 1: same arithmetic path (bf16 matmul, f32 accumulation + BN/SiLU)
    # but INCLUDING the Linear bias that the kernel omits -> proves the bias is
    # cancelled by training-mode BatchNorm.
    y_ref = jnp.dot(x.astype(jnp.bfloat16), weight.T.astype(jnp.bfloat16),
                    preferred_element_type=jnp.float32) + bias
    m = jnp.mean(y_ref, axis=0, keepdims=True)
    v = jnp.mean((y_ref - m) ** 2, axis=0, keepdims=True)
    y_bn = (y_ref - m) * lax.rsqrt(v + BN_EPS) * gamma + beta
    ref = y_bn * jax.nn.sigmoid(y_bn)
    assert jnp.allclose(out, ref, atol=1e-3, rtol=1e-3), "mismatch vs bf16 reference"

    # Reference 2: full-f32 PyTorch forward semantics; loose tolerance only
    # accounts for bf16 matmul input rounding.
    y32 = x @ weight.T + bias
    m32 = jnp.mean(y32, axis=0, keepdims=True)
    v32 = jnp.mean((y32 - m32) ** 2, axis=0, keepdims=True)
    y_bn32 = (y32 - m32) / jnp.sqrt(v32 + BN_EPS) * gamma + beta
    ref32 = y_bn32 * jax.nn.sigmoid(y_bn32)
    assert jnp.allclose(out, ref32, atol=1e-1, rtol=1e-1), "mismatch vs f32 reference"

    print("KERNEL_OK")
</pallas_src>

<mosaic_0001>
module attributes {stable_mosaic.version = 11 : i64} {
  func.func @fc_block_kernel(%arg0: i32, %arg1: memref<8x32xbf16, #tpu.memory_space<vmem>>, %arg2: memref<32x128xbf16, #tpu.memory_space<vmem>>, %arg3: memref<2x128xf32, #tpu.memory_space<vmem>>, %arg4: memref<8x128xf32, #tpu.memory_space<vmem>>) attributes {dimension_semantics = [#tpu.dimension_semantics<parallel>], iteration_bounds = array<i64: 1>, scalar_prefetch = 0 : i64, scratch_operands = 0 : i64, tpu.core_type = #tpu.core_type<tc>, window_params = [{pipeline_mode = #tpu.pipeline_mode<synchronous>, transform_indices = @transform_0, window_bounds = array<i64: 8, 32>}, {transform_indices = @transform_1, window_bounds = array<i64: 32, 128>}, {transform_indices = @transform_2, window_bounds = array<i64: 2, 128>}, {transform_indices = @transform_3, window_bounds = array<i64: 8, 128>}]} {
    %c0 = arith.constant 0 : index
    %c0_0 = arith.constant 0 : index
    %0 = vector.load %arg1[%c0, %c0_0] : memref<8x32xbf16, #tpu.memory_space<vmem>>, vector<8x32xbf16>
    %c0_1 = arith.constant 0 : index
    %c0_2 = arith.constant 0 : index
    %1 = vector.load %arg2[%c0_1, %c0_2] : memref<32x128xbf16, #tpu.memory_space<vmem>>, vector<32x128xbf16>
    %cst = arith.constant dense<0.000000e+00> : vector<8x128xf32>
    %2 = tpu.matmul %0, %1, %cst {dimension_numbers = #tpu.dot_dimension_numbers<[1], [0], [0], [1], [0, 0, 1, 1], [], []>} : vector<8x32xbf16>, vector<32x128xbf16>, vector<8x128xf32> -> vector<8x128xf32>
    %cst_3 = arith.constant dense<0.000000e+00> : vector<128xf32>
    %3 = vector.multi_reduction <add>, %2, %cst_3 [0] : vector<8x128xf32> to vector<128xf32>
    %4 = vector.shape_cast %3 : vector<128xf32> to vector<1x128xf32>
    %5 = arith.mulf %2, %2 : vector<8x128xf32>
    %cst_4 = arith.constant dense<0.000000e+00> : vector<128xf32>
    %6 = vector.multi_reduction <add>, %5, %cst_4 [0] : vector<8x128xf32> to vector<128xf32>
    %7 = vector.shape_cast %6 : vector<128xf32> to vector<1x128xf32>
    %cst_5 = arith.constant 1.250000e-01 : f32
    %8 = vector.broadcast %cst_5 : f32 to vector<1x128xf32>
    %9 = arith.mulf %4, %8 : vector<1x128xf32>
    %cst_6 = arith.constant 1.250000e-01 : f32
    %10 = vector.broadcast %cst_6 : f32 to vector<1x128xf32>
    %11 = arith.mulf %7, %10 : vector<1x128xf32>
    %12 = arith.mulf %9, %9 : vector<1x128xf32>
    %13 = arith.subf %11, %12 : vector<1x128xf32>
    %cst_7 = arith.constant 0.000000e+00 : f32
    %14 = vector.broadcast %cst_7 : f32 to vector<1x128xf32>
    %15 = arith.maximumf %13, %14 : vector<1x128xf32>
    %cst_8 = arith.constant 9.99999974E-6 : f32
    %16 = vector.broadcast %cst_8 : f32 to vector<1x128xf32>
    %17 = arith.addf %15, %16 : vector<1x128xf32>
    %18 = math.rsqrt %17 : vector<1x128xf32>
    %c0_9 = arith.constant 0 : index
    %c0_10 = arith.constant 0 : index
    %19 = vector.load %arg3[%c0_9, %c0_10] : memref<2x128xf32, #tpu.memory_space<vmem>>, vector<1x128xf32>
    %c1 = arith.constant 1 : index
    %c0_11 = arith.constant 0 : index
    %20 = vector.load %arg3[%c1, %c0_11] : memref<2x128xf32, #tpu.memory_space<vmem>>, vector<1x128xf32>
    %21 = vector.broadcast %9 : vector<1x128xf32> to vector<8x128xf32>
    %22 = arith.subf %2, %21 : vector<8x128xf32>
    %23 = arith.mulf %18, %19 : vector<1x128xf32>
    %24 = vector.broadcast %23 : vector<1x128xf32> to vector<8x128xf32>
    %25 = arith.mulf %22, %24 : vector<8x128xf32>
    %26 = vector.broadcast %20 : vector<1x128xf32> to vector<8x128xf32>
    %27 = arith.addf %25, %26 : vector<8x128xf32>
    %28 = arith.negf %27 : vector<8x128xf32>
    %29 = math.exp %28 : vector<8x128xf32>
    %cst_12 = arith.constant 1.000000e+00 : f32
    %30 = vector.broadcast %cst_12 : f32 to vector<8x128xf32>
    %31 = arith.addf %30, %29 : vector<8x128xf32>
    %32 = arith.divf %30, %31 : vector<8x128xf32>
    %33 = arith.mulf %27, %32 : vector<8x128xf32>
    %c0_13 = arith.constant 0 : index
    %c0_14 = arith.constant 0 : index
    %34 = vector.load %arg4[%c0_13, %c0_14] : memref<8x128xf32, #tpu.memory_space<vmem>>, vector<8x128xf32>
    tpu.vector_store %arg4[%c0_13, %c0_14], %33 {strides = array<i32>} : memref<8x128xf32, #tpu.memory_space<vmem>>, vector<8x128xf32>,
    return
  }
  func.func @transform_0(%arg0: i32) -> (i32, i32) {
    %c0_i32 = arith.constant 0 : i32
    %c0_i32_0 = arith.constant 0 : i32
    %c0_i32_1 = arith.constant 0 : i32
    return %c0_i32, %c0_i32_0 : i32, i32
  }
  func.func @transform_1(%arg0: i32) -> (i32, i32) {
    %c0_i32 = arith.constant 0 : i32
    %c0_i32_0 = arith.constant 0 : i32
    return %c0_i32, %arg0 : i32, i32
  }
  func.func @transform_2(%arg0: i32) -> (i32, i32) {
    %c0_i32 = arith.constant 0 : i32
    %c0_i32_0 = arith.constant 0 : i32
    return %c0_i32, %arg0 : i32, i32
  }
  func.func @transform_3(%arg0: i32) -> (i32, i32) {
    %c0_i32 = arith.constant 0 : i32
    %c0_i32_0 = arith.constant 0 : i32
    return %c0_i32, %arg0 : i32, i32
  }
}

</mosaic_0001>

<llo_original>
// kernel: tpu_custom_call.1
$region0: #{tpu_custom_call.1}
  #allocation0 [shape = 'u32[]', space=smem, size = 0x4, offset = 0x4, fixed_abs, tag = 'smem constant byte address 0x4 - core index']
  #allocation1 [shape = 'u32[144,128]{1,0:T(1,128)}', space=vmem, size = 0x12000, scoped, tag = 'internal scratch']
  %s0 = inlined_call_operand.hbm [shape: bf16[8,32], index: 0, kind: input, shape index: {}]
  %s1 = inlined_call_operand.hbm [shape: bf16[32,128], index: 1, kind: input, shape index: {}]
  %s2 = inlined_call_operand.vmem [shape: f32[2,128], index: 2, kind: input, shape index: {}]
  %s3 = inlined_call_operand.hbm [shape: f32[8,128], index: 3, kind: output, shape index: {}]
  %s4 = sld [smem:[#allocation0]]
  $region30: #{tpu_custom_call.1} parent=0
    _
  %s6 = ssub.s32 1, %s4
  %s7 = scalar_select 0, %s6, %s4
  $region1: #{tpu_custom_call.1} parent=0
    #allocation2 [shape = 'u8[2048]{0}', space=vmem, size = 0x800, scoped, tag = 'input window, operand 0, single buffered']
    #allocation3 [shape = 's32[1]{0}', space=sflag, size = 0x4, scoped, tag = 'scoped memory for tpu_custom_call.1']
    #allocation4 [shape = 's32[1]{0}', space=sflag, size = 0x4, scoped, tag = 'scoped memory for tpu_custom_call.1']
    #allocation5 [shape = 'u8[8192]{0}', space=vmem, size = 0x2000, scoped, tag = 'input window, operand 1, single buffered']
    #allocation6 [shape = 's32[1]{0}', space=sflag, size = 0x4, scoped, tag = 'scoped memory for tpu_custom_call.1']
    #allocation7 [shape = 'u8[4096]{0}', space=vmem, size = 0x1000, scoped, tag = 'output window, operand 0, single buffered']
    %8 = vsyncpa [#allocation3], 0
    %9 = vsyncpa [#allocation6], 0
    %10 = vsyncpa [#allocation4], 0
    // Predicated region
    $region2: #{tpu_custom_call.1} parent=1 // pred_check
      _
    $region3: #{tpu_custom_call.1} parent=1 // pred_check_branch
      %12 = sbr.rel (0) target = $region5
    $region4: #{tpu_custom_call.1} parent=1 // pred_region
      %s14 = ssub.s32 64, 64
      %15 = vsyncadd [#allocation3], %s14
      %s17 = sshll.u32 [#allocation2], 4
      %s18 = int_to_ptr.vmem [resolvable:$true] %s17
      %20 = dma.hbm_to_vmem [thread:$0]  %s0, 64, %s18, [#allocation3]
    $region5: #{tpu_custom_call.1} parent=1 // pred_fallthru
      _
    // Predicated region
    $region6: #{tpu_custom_call.1} parent=1 // pred_check
      _
    $region7: #{tpu_custom_call.1} parent=1 // pred_check_branch
      %22 = sbr.rel (0) target = $region9
    $region8: #{tpu_custom_call.1} parent=1 // pred_region
      %s24 = ssub.s32 256, 256
      %25 = vsyncadd [#allocation6], %s24
      %s26 = sshll.u32 [#allocation5], 4
      %s27 = int_to_ptr.vmem [resolvable:$true] %s26
      %32 = dma.hbm_to_vmem [thread:$0]  %s1, 256, %s27, [#allocation6], 64, 64, 4
    $region9: #{tpu_custom_call.1} parent=1 // pred_fallthru
      _
    // Predicated region
    $region10: #{tpu_custom_call.1} parent=1 // pred_check
      _
    $region11: #{tpu_custom_call.1} parent=1 // pred_check_branch
      %34 = sbr.rel (0) target = $region13
    $region12: #{tpu_custom_call.1} parent=1 // pred_region
      _
    $region13: #{tpu_custom_call.1} parent=1 // pred_fallthru
      _
    // Predicated region
    $region14: #{tpu_custom_call.1} parent=1 // pred_check
      _
    $region15: #{tpu_custom_call.1} parent=1 // pred_check_branch
      %36 = sbr.rel (0) target = $region17
    $region16: #{tpu_custom_call.1} parent=1 // pred_region
      %37 = dma.done [#allocation3], 64
    $region17: #{tpu_custom_call.1} parent=1 // pred_fallthru
      _
    // Predicated region
    $region18: #{tpu_custom_call.1} parent=1 // pred_check
      _
    $region19: #{tpu_custom_call.1} parent=1 // pred_check_branch
      %39 = sbr.rel (0) target = $region21
    $region20: #{tpu_custom_call.1} parent=1 // pred_region
      %40 = dma.done [#allocation6], 256
    $region21: #{tpu_custom_call.1} parent=1 // pred_fallthru
      _
    %v42 = vld [vmem:[#allocation2] sm:$0xf]
    %v43 = vld [vmem:[#allocation5] sm:$0xf]
    %v44 = vld [vmem:[#allocation5 + $0x4] sm:$0xf]
    %v45 = vld [vmem:[#allocation5 + $0x8] sm:$0xf]
    %v46 = vld [vmem:[#allocation5 + $0xc] sm:$0xf]
    %v51 = vunpack.c.l.b16 %v43
    %v52 = vunpack.c.l.b16 %v44
    %v53 = vunpack.c.l.b16 %v45
    %v54 = vunpack.c.l.b16 %v46
    %v55 = vpack.c.b16 %v52, %v51
    %v56 = vpack.c.b16 %v54, %v53
    %vm59 = vcmask 261120
    %v61 = vsel %vm59, %v42, 0
    %63 = vmatprep.subr.bf16.mxu0 0
    %64 = vmatpush1.bf16.msra.mxu0 %v55
    %65 = vmatprep.subr.bf16.mxu0 0
    %66 = vmatpush1.bf16.msra.mxu0 %v56
    %67 = vmatprep.subr.bf16.mxu0 0
    %68 = vmatpush1.bf16.msra.mxu0 0
    %69 = vmatprep.subr.bf16.mxu0 0
    %70 = vmatpush1.bf16.msra.mxu0 0
    %71 = vmatprep.subr.bf16.mxu0 0
    %72 = vmatpush1.bf16.msra.mxu0 0
    %73 = vmatprep.subr.bf16.mxu0 0
    %74 = vmatpush1.bf16.msra.mxu0 0
    %75 = vmatprep.subr.bf16.mxu0 0
    %76 = vmatpush1.bf16.msra.mxu0 0
    %77 = vmatprep.subr.bf16.mxu0 0
    %78 = vmatpush1.bf16.msra.mxu0 0
    %79 = vmatprep.subr.bf16.mxu0 0
    %80 = vmatpush1.bf16.msra.mxu0 0
    %81 = vmatprep.subr.bf16.mxu0 0
    %82 = vmatpush1.bf16.msra.mxu0 0
    %83 = vmatprep.subr.bf16.mxu0 0
    %84 = vmatpush1.bf16.msra.mxu0 0
    %85 = vmatprep.subr.bf16.mxu0 0
    %86 = vmatpush1.bf16.msra.mxu0 0
    %87 = vmatprep.subr.bf16.mxu0 0
    %88 = vmatpush1.bf16.msra.mxu0 0
    %89 = vmatprep.subr.bf16.mxu0 0
    %90 = vmatpush1.bf16.msra.mxu0 0
    %91 = vmatprep.subr.bf16.mxu0 0
    %92 = vmatpush1.bf16.msra.mxu0 0
    %93 = vmatprep.subr.bf16.mxu0 0
    %94 = vmatpush1.bf16.msra.mxu0 0
    %95 = vmatprep.mubr.bf16.mxu0 0
    %96 = vmatmul.mubr.bf16.gmra.mrb[0].mxu0 %v61
    %v97 = vpop.f32.mrb[0].mxu0
    %v98 = vadd.f32 0.0, %v97
    %v99 = vpop.f32.mrb[0].mxu0
    %v100 = vpop.f32.mrb[0].mxu0
    %v101 = vpop.f32.mrb[0].mxu0
    %102 = vdwg.mxu0
    %v103 = vrot.slane %v98, 4
    %v104 = vadd.f32 %v98, %v103
    %v105 = vrot.slane %v104, 2
    %v106 = vadd.f32 %v104, %v105
    %v107 = vrot.slane %v106, 1
    %v108 = vadd.f32 %v106, %v107
    %v109 = vmul.f32 %v98, %v98
    %v110 = vrot.slane %v109, 4
    %v111 = vadd.f32 %v109, %v110
    %v112 = vrot.slane %v111, 2
    %v113 = vadd.f32 %v111, %v112
    %v114 = vrot.slane %v113, 1
    %v115 = vadd.f32 %v113, %v114
    %v116 = vmul.f32 %v108, 0.125
    %v117 = vmul.f32 %v115, 0.125
    %v118 = vmul.f32 %v116, %v116
    %v119 = vsub.f32 %v117, %v118
    %v120 = vmax.f32 %v119, 0.0
    %v121 = vadd.f32 %v120, 1e-05
    %v122 = vrsqrt.pop %v121
    %v123 = vld [vmem:[%s2] sm:$0x1]
    %v124 = vld [vmem:[%s2 + $0x1] sm:$0x1]
    %v125 = vsub.f32 %v98, %v116
    %v126 = vmul.f32 %v122, %v123
    %v127 = vlaneseq
    %v128 = vshrl.u32 %v127, 7
    %v129 = vsub.s32 0, %v128
    %v130 = vrot.slane %v126, %v129
    %v131 = vmul.f32 %v125, %v130
    %v132 = vlaneseq
    %v133 = vshrl.u32 %v132, 7
    %v134 = vsub.s32 0, %v133
    %v135 = vrot.slane %v124, %v134
    %v136 = vadd.f32 %v131, %v135
    %v137 = vxor.u32 %v136, 2147483648
    %v138 = vmul.f32 %v137, 1.442695
    %v139 = vpow.pop %v138
    %v140 = vadd.f32 %v139, 1.0
    %v141 = vrcp.pop %v140
    %v142 = vmul.f32 1.0, %v141
    %v143 = vmul.f32 %v136, %v142
    %144 = vst [vmem:[#allocation7] sm:$0xff] %v143
    // Predicated region
    $region22: #{tpu_custom_call.1} parent=1 // pred_check
      _
    $region23: #{tpu_custom_call.1} parent=1 // pred_check_branch
      %146 = sbr.rel (0) target = $region25
    $region24: #{tpu_custom_call.1} parent=1 // pred_region
      %s148 = ssub.s32 128, 128
      %149 = vsyncadd [#allocation4], %s148
      %s151 = sshll.u32 [#allocation7], 4
      %s152 = int_to_ptr.vmem [resolvable:$true] %s151
      %154 = dma.vmem_to_hbm [thread:$0]  %s152, 128, %s3, [#allocation4]
    $region25: #{tpu_custom_call.1} parent=1 // pred_fallthru
      _
    // Predicated region
    $region26: #{tpu_custom_call.1} parent=1 // pred_check
      _
    $region27: #{tpu_custom_call.1} parent=1 // pred_check_branch
      %156 = sbr.rel (0) target = $region29
    $region28: #{tpu_custom_call.1} parent=1 // pred_region
      %157 = dma.done [#allocation4], 128
    $region29: #{tpu_custom_call.1} parent=1 // pred_fallthru
      _
    %158 = vsyncpa [#allocation3], 1
    %159 = vsyncpa [#allocation6], 1
    %160 = vsyncpa [#allocation4], 1

</llo_original>
